<compile_context>
chip_gen: v5e
topology: v5e:2x2
jax: 0.10.0
libtpu: 0.0.40
codegen_flags: <defaults>
</compile_context>

<pallas_src>
import functools

import numpy as np

import jax
import jax.numpy as jnp
from jax import lax
from jax.experimental import pallas as pl
from jax.experimental.pallas import tpu as pltpu


EMB_DIM = 32      # assumed label-embedding width (mirrors the Encoder assumption)
OUT_CH = 3        # color LLD output

CONV_CFGS = [
    # (Cin, Cout, kernel, kind)   kind: "up" = ConvTranspose2d(stride=2), "same" = Conv2d
    (256, 128, 2, "up"),
    (128, 64, 2, "up"),
    (64, 32, 3, "up"),
    (32, 16, 3, "up"),
    (16, OUT_CH, 3, "same"),
]


# -----------------------------------------------------------------------------
# Constant 0/1 permutation matrices: phase-stacked rows -> raster-order rows after
# a stride-2 transposed conv.  Tiny MXU matmuls; they replace both the previous
# huge zero-dilation scatter matrices (d3/d4) and any strided-scatter stores.
# -----------------------------------------------------------------------------
def _perm_upsample(h, w):
    n = 4 * h * w
    p = np.zeros((n, n), np.float32)
    for a in range(2):
        for b in range(2):
            for i in range(h):
                for j in range(w):
                    src = (a * 2 + b) * h * w + i * w + j
                    dst = (2 * i + a) * (2 * w) + (2 * j + b)
                    p[dst, src] = 1.0
    return p


_P1 = _perm_upsample(2, 2)     # (16, 16)    block 1:  2x2  ->  4x4
_P2 = _perm_upsample(4, 4)     # (64, 64)    block 2:  4x4  ->  8x8
_P3 = _perm_upsample(8, 8)     # (256, 256)  block 3:  8x8  -> 16x16


# -----------------------------------------------------------------------------
# pltpu.roll rotation-direction probe (one tiny eager pallas_call, cached).
# Returns s such that pltpu.roll(x, (s*off) % n, axis)[..., p] == x[..., (p+off) % n].
# -----------------------------------------------------------------------------
_ROLL_SIGN = None


def _get_roll_sign():
    global _ROLL_SIGN
    if _ROLL_SIGN is None:
        def _probe(x_ref, o_ref):
            o_ref[...] = pltpu.roll(x_ref[...], 1, 1)

        x = jnp.tile(jnp.arange(128, dtype=jnp.float32)[None, :], (8, 1))
        y = pl.pallas_call(
            _probe, out_shape=jax.ShapeDtypeStruct((8, 128), jnp.float32))(x)
        # jnp.roll convention: element 127 lands at index 0.
        _ROLL_SIGN = -1 if float(y[0, 0]) == 127.0 else 1
    return _ROLL_SIGN


# -----------------------------------------------------------------------------
# Kernel 1 helpers: phase-decomposed stride-2 transposed convs (pixel-major,
# activations are (H*W, C) raster-order matrices, channels on the lane axis).
# -----------------------------------------------------------------------------
def _up2(x, w_ref, p_ref, bias):
    """ConvTranspose2d(k=2, s=2, p=0) + bias + ReLU.  x: (h*w, Cin) raster order.

    Each output pixel (2i+a, 2j+b) depends on exactly one input pixel (i, j), so the
    block is 4 phase matmuls + one constant permutation matmul back to raster order.
    """
    ys = [jnp.dot(x, w_ref[p], preferred_element_type=jnp.float32) for p in range(4)]
    stacked = jnp.concatenate(ys, axis=0)
    y = jnp.dot(p_ref[...], stacked, preferred_element_type=jnp.float32)
    return jnp.maximum(y + bias, 0.0)


def _up3(x, w_ref, p_ref, bias, h, w):
    """ConvTranspose2d(k=3, s=2, p=1, out_pad=1) + bias + ReLU (phase decomposition).

    Output pixel (2i+a, 2j+b) only touches input pixels (i,j), (i,j+1), (i+1,j),
    (i+1,j+1), so the taps run on the small un-dilated raster.  If p_ref is None the
    result stays phase-stacked (row order [a, b, i, j]).
    """
    npix = h * w
    cin = x.shape[1]
    xe = jnp.concatenate([x, jnp.zeros((w + 8, cin), x.dtype)], axis=0)
    xj = xe[1:npix + 1]                    # x[i, j+1]
    xi = xe[w:npix + w]                    # x[i+1, j]   (zero rows past the bottom edge)
    xij = xe[w + 1:npix + w + 1]           # x[i+1, j+1]
    # zero the wrapped right-edge rows (j == w-1) of the +1-in-j shifts
    col = lax.broadcasted_iota(jnp.int32, (npix, 1), 0) & (w - 1)
    mj = (col != (w - 1)).astype(x.dtype)
    xj = xj * mj
    xij = xij * mj

    def dot(a, kh, kw):
        return jnp.dot(a, w_ref[kh * 3 + kw], preferred_element_type=jnp.float32)

    y00 = dot(x, 1, 1)
    y01 = dot(x, 1, 2) + dot(xj, 1, 0)
    y10 = dot(x, 2, 1) + dot(xi, 0, 1)
    y11 = dot(x, 2, 2) + dot(xj, 2, 0) + dot(xi, 0, 2) + dot(xij, 0, 0)
    stacked = jnp.concatenate([y00, y01, y10, y11], axis=0)
    if p_ref is not None:
        stacked = jnp.dot(p_ref[...], stacked, preferred_element_type=jnp.float32)
    return jnp.maximum(stacked + bias, 0.0)


def _decoder_head_kernel(g_per_step, z_ref, w1_ref, w2_ref, w3_ref, w4_ref,
                         p1_ref, p2_ref, p3_ref,
                         b1_ref, b2_ref, b3_ref, b4_ref, o_ref):
    b1 = b1_ref[...]
    b2 = b2_ref[...]
    b3 = b3_ref[...]
    b4 = b4_ref[...]
    for g in range(g_per_step):                                      # G images per grid step
        z = z_ref[g]                                                 # (4, 256)    2x2
        x1 = _up2(z, w1_ref, p1_ref, b1[g:g + 1, :])                 # (16, 128)   4x4
        x2 = _up2(x1, w2_ref, p2_ref, b2[g:g + 1, :])                # (64, 64)    8x8
        x3 = _up3(x2, w3_ref, p3_ref, b3[g:g + 1, :], 8, 8)          # (256, 32)   16x16
        x4 = _up3(x3, w4_ref, None, b4[g:g + 1, :], 16, 16)          # (1024, 16)  32x32 phase-stacked
        o_ref[g] = x4


# -----------------------------------------------------------------------------
# Kernel 2: the stride-1 tail (Conv 16->C k=3 + Conv C->C k=5 + Tanh), channel-major:
# activations are (C, 1024) with the full 32x32 raster lane-dense; taps are lane
# rolls + border masks; output is written NCHW-flat (B, C, 1024).
# -----------------------------------------------------------------------------
def _decoder_tail_kernel(g_per_step, roll_sign, x_ref, w5_ref, w6_ref,
                         b5_ref, b6_ref, o_ref):
    f32 = jnp.float32
    n = x_ref.shape[-1]                            # 1024 = 32*32 (lane axis)
    lane = lax.broadcasted_iota(jnp.int32, (1, n), 1)
    irow = lane >> 5                               # image row 0..31
    icol = lane & 31                               # image col 0..31

    def conv(x, w_flat_ref, k):
        """stride-1 'same' conv, channel-major: x (Cin, 1024) -> (Cout, 1024)."""
        r = k // 2
        pieces = []
        for di in range(-r, r + 1):
            for dj in range(-r, r + 1):
                off = di * 32 + dj
                shifted = x if off == 0 else pltpu.roll(x, (roll_sign * off) % n, 1)
                valid = ((irow + di >= 0) & (irow + di < 32) &
                         (icol + dj >= 0) & (icol + dj < 32))
                pieces.append(jnp.where(valid, shifted, 0.0))        # zero out-of-image taps
        stacked = jnp.concatenate(pieces, axis=0)                    # (k*k*Cin, 1024)
        return jnp.dot(w_flat_ref[...], stacked, preferred_element_type=f32)

    b6 = b6_ref[...]                                                 # (C, 1)
    for g in range(g_per_step):
        x4 = x_ref[g]                                                # (16, 1024)
        x5 = jnp.maximum(conv(x4, w5_ref, 3) + b5_ref[g], 0.0)       # (C, 1024)
        y = jnp.tanh(conv(x5, w6_ref, 5) + b6)                       # (C, 1024)
        o_ref[g] = y                                                 # lane-dense store


# -----------------------------------------------------------------------------
# Host wrapper: weight re-layout, bias folding, two pallas_calls, tiny XLA glue.
# -----------------------------------------------------------------------------
def _const_spec(a):
    nd = a.ndim
    return pl.BlockSpec(a.shape, lambda i, _n=nd: (0,) * _n)


def _batch_spec(a, g):
    nd = a.ndim
    return pl.BlockSpec((g,) + a.shape[1:], lambda i, _n=nd: (i,) + (0,) * (_n - 1))


def _phases_k2(w_pt):
    # ConvTranspose2d weight (Cin, Cout, 2, 2) -> per-phase (4, Cin, Cout)
    return jnp.stack([w_pt[:, :, a, b] for a in range(2) for b in range(2)])


def _taps_k3(w_pt):
    # ConvTranspose2d weight (Cin, Cout, 3, 3) -> per-tap (9, Cin, Cout)
    return jnp.stack([w_pt[:, :, kh, kw] for kh in range(3) for kw in range(3)])


def _conv_flat(w_pt):
    # Conv2d weight (Cout, Cin, k, k) -> (Cout, k*k*Cin), tap-major columns
    co, ci, k, _ = w_pt.shape
    return jnp.transpose(w_pt, (0, 2, 3, 1)).reshape(co, k * k * ci)


def make_decoder_forward(images_per_step=1):
    g = images_per_step
    roll_sign = _get_roll_sign()
    head_kernel = functools.partial(_decoder_head_kernel, g)
    tail_kernel = functools.partial(_decoder_tail_kernel, g, roll_sign)
    cparams = pltpu.CompilerParams(dimension_semantics=("parallel",),
                                   vmem_limit_bytes=32 * 1024 * 1024)

    @jax.jit
    def decoder_forward(latent, label_embeddings, params):
        B = latent.shape[0]
        assert B % g == 0, (B, g)
        C = OUT_CH
        f32 = jnp.float32

        # Unflatten (B, 1024) -> NCHW (B, 256, 2, 2) -> raster-order rows (B, 4, 256).
        z = latent.reshape(B, 256, 2, 2).transpose(0, 2, 3, 1).reshape(B, 4, 256).astype(f32)

        w1 = _phases_k2(params["w_pt"][0]).astype(f32)       # (4, 256, 128)
        w2 = _phases_k2(params["w_pt"][1]).astype(f32)       # (4, 128, 64)
        w3 = _taps_k3(params["w_pt"][2]).astype(f32)         # (9, 64, 32)
        w4 = _taps_k3(params["w_pt"][3]).astype(f32)         # (9, 32, 16)
        w5 = _conv_flat(params["w_pt"][4]).astype(f32)       # (C, 144)
        w6 = _conv_flat(params["w_last_pt"]).astype(f32)     # (C, 75)

        # Fold conv bias + label-embedding projection into one (B, Cout) bias per block.
        biases = [(label_embeddings @ wl + bl + bc).astype(f32)
                  for wl, bl, bc in zip(params["wlab"], params["blab"], params["bconv"])]
        b1, b2, b3, b4, b5 = biases
        b5 = b5[:, :, None]                                  # (B, C, 1) channel-major
        b6 = params["b_last"].reshape(C, 1).astype(f32)

        p1 = jnp.asarray(_P1)
        p2 = jnp.asarray(_P2)
        p3 = jnp.asarray(_P3)

        # ---- kernel 1: the four transposed-conv blocks (pixel-major) ----
        head_in = [z, w1, w2, w3, w4, p1, p2, p3, b1, b2, b3, b4]
        head_specs = ([_batch_spec(z, g)]
                      + [_const_spec(a) for a in (w1, w2, w3, w4, p1, p2, p3)]
                      + [_batch_spec(b, g) for b in (b1, b2, b3, b4)])
        x4p = pl.pallas_call(
            head_kernel,
            out_shape=jax.ShapeDtypeStruct((B, 1024, 16), f32),
            grid=(B // g,),
            in_specs=head_specs,
            out_specs=pl.BlockSpec((g, 1024, 16), lambda i: (i, 0, 0)),
            compiler_params=cparams,
        )(*head_in)

        # Phase-stacked pixel-major rows [a, b, i, j] x channels -> channel-major
        # NCHW-flat (B, 16, 1024).  One tiny XLA transpose (64 KB / image).
        x4 = (x4p.reshape(B, 2, 2, 16, 16, 16)
              .transpose(0, 5, 3, 1, 4, 2)
              .reshape(B, 16, 1024))

        # ---- kernel 2: the two stride-1 convs (channel-major, lane-dense output) ----
        out = pl.pallas_call(
            tail_kernel,
            out_shape=jax.ShapeDtypeStruct((B, C, 1024), f32),
            grid=(B // g,),
            in_specs=[_batch_spec(x4, g), _const_spec(w5), _const_spec(w6),
                      _batch_spec(b5, g), _const_spec(b6)],
            out_specs=pl.BlockSpec((g, C, 1024), lambda i: (i, 0, 0)),
            compiler_params=cparams,
        )(x4, w5, w6, b5, b6)

        return out.reshape(B, C, 32, 32)      # already NCHW; no host transpose needed

    return decoder_forward


# -----------------------------------------------------------------------------
# Deterministic parameter construction (PyTorch weight layouts).
# -----------------------------------------------------------------------------
def init_params(key):
    p = {"w_pt": [], "bconv": [], "wlab": [], "blab": []}
    for cin, cout, k, kind in CONV_CFGS:
        key, k1, k2, k3, k4 = jax.random.split(key, 5)
        scale = 1.0 / np.sqrt(cin * k * k)
        if kind == "up":    # ConvTranspose2d weight layout: (Cin, Cout, kH, kW)
            w = jax.random.normal(k1, (cin, cout, k, k), jnp.float32) * (2.0 * scale)
        else:               # Conv2d weight layout: (Cout, Cin, kH, kW)
            w = jax.random.normal(k1, (cout, cin, k, k), jnp.float32) * scale
        p["w_pt"].append(w)
        p["bconv"].append(jax.random.normal(k2, (cout,), jnp.float32) * 0.05)
        p["wlab"].append(jax.random.normal(k3, (EMB_DIM, cout), jnp.float32)
                         * (0.5 / np.sqrt(EMB_DIM)))
        p["blab"].append(jax.random.normal(k4, (cout,), jnp.float32) * 0.05)
    key, k5, k6 = jax.random.split(key, 3)
    p["w_last_pt"] = (jax.random.normal(k5, (OUT_CH, OUT_CH, 5, 5), jnp.float32)
                      / np.sqrt(OUT_CH * 25))
    p["b_last"] = jax.random.normal(k6, (OUT_CH,), jnp.float32) * 0.05
    return p


# -----------------------------------------------------------------------------
# Pure-JAX/XLA reference with identical assumed semantics (for cross-checking).
# -----------------------------------------------------------------------------
@jax.jit
def reference_forward(latent, label_embeddings, params):
    B = latent.shape[0]
    x = latent.reshape(B, 256, 2, 2).transpose(0, 2, 3, 1)   # Unflatten -> NHWC
    dn = ("NHWC", "HWIO", "NHWC")
    for (cin, cout, k, kind), w_pt, wl, bl, bc in zip(
            CONV_CFGS, params["w_pt"], params["wlab"], params["blab"], params["bconv"]):
        if kind == "up":
            pad, opad = ((1, 1) if k == 3 else (0, 0))
            w = jnp.transpose(jnp.flip(w_pt, axis=(2, 3)), (2, 3, 0, 1))
            x = lax.conv_general_dilated(
                x, w, window_strides=(1, 1),
                padding=[(k - 1 - pad, k - 1 - pad + opad)] * 2,
                lhs_dilation=(2, 2), dimension_numbers=dn,
                precision=lax.Precision.HIGHEST)
        else:
            w = jnp.transpose(w_pt, (2, 3, 1, 0))
            x = lax.conv_general_dilated(
                x, w, (1, 1), padding=[(1, 1)] * 2, dimension_numbers=dn,
                precision=lax.Precision.HIGHEST)
        bias = label_embeddings @ wl + bl + bc
        x = jnp.maximum(x + bias[:, None, None, :], 0.0)
    w = jnp.transpose(params["w_last_pt"], (2, 3, 1, 0))
    x = lax.conv_general_dilated(
        x, w, (1, 1), padding=[(2, 2)] * 2, dimension_numbers=dn,
        precision=lax.Precision.HIGHEST)
    x = jnp.tanh(x + params["b_last"][None, None, None, :])
    return x.transpose(0, 3, 1, 2)   # NCHW


if __name__ == "__main__":
    key = jax.random.PRNGKey(0)
    k_params, k_lat, k_lab = jax.random.split(key, 3)

    params = init_params(k_params)

    B = 4                                                   # small batch, even grid on v7x
    latent = jax.random.normal(k_lat, (B, 256 * 2 * 2), jnp.float32)
    label_embeddings = jax.random.normal(k_lab, (B, EMB_DIM), jnp.float32)

    decoder_forward = make_decoder_forward(images_per_step=2)   # 2 images per grid step
    out = jax.block_until_ready(decoder_forward(latent, label_embeddings, params))

    assert out.shape == (B, OUT_CH, 32, 32), out.shape
    assert bool(jnp.all(jnp.isfinite(out)))

    # Cross-check the Pallas kernels against the pure-JAX reference.
    ref = reference_forward(latent, label_embeddings, params)
    np.testing.assert_allclose(np.asarray(out), np.asarray(ref), atol=7e-2, rtol=7e-2)

    print("KERNEL_OK")
</pallas_src>

<mosaic_0001>
module attributes {stable_mosaic.version = 11 : i64} {
  func.func @_probe(%arg0: memref<8x128xf32, #tpu.memory_space<vmem>>, %arg1: memref<8x128xf32, #tpu.memory_space<vmem>>) attributes {dimension_semantics = [], scalar_prefetch = 0 : i64, scratch_operands = 0 : i64, tpu.core_type = #tpu.core_type<tc>} {
    %c0 = arith.constant 0 : index
    %c0_0 = arith.constant 0 : index
    %0 = vector.load %arg0[%c0, %c0_0] : memref<8x128xf32, #tpu.memory_space<vmem>>, vector<8x128xf32>
    %c1_i32 = arith.constant 1 : i32
    %1 = tpu.dynamic_rotate %0 by %c1_i32 dim 1 : vector<8x128xf32>, i32 -> vector<8x128xf32>
    %c0_1 = arith.constant 0 : index
    %c0_2 = arith.constant 0 : index
    %2 = vector.load %arg1[%c0_1, %c0_2] : memref<8x128xf32, #tpu.memory_space<vmem>>, vector<8x128xf32>
    tpu.vector_store %arg1[%c0_1, %c0_2], %1 {strides = array<i32>} : memref<8x128xf32, #tpu.memory_space<vmem>>, vector<8x128xf32>,
    return
  }
}

</mosaic_0001>

<llo_original>
// kernel: tpu_custom_call.1
$region0: #{tpu_custom_call.1}
  #allocation0 [shape = 'u32[]', space=smem, size = 0x4, offset = 0x4, fixed_abs, tag = 'smem constant byte address 0x4 - core index']
  #allocation1 [shape = 'u32[72,128]{1,0:T(1,128)}', space=vmem, size = 0x9000, scoped, tag = 'internal scratch']
  %s0 = inlined_call_operand.hbm [shape: f32[8,128], index: 0, kind: input, shape index: {}]
  %s1 = inlined_call_operand.hbm [shape: f32[8,128], index: 1, kind: output, shape index: {}]
  %s2 = sld [smem:[#allocation0]]
  $region18: #{tpu_custom_call.1} parent=0
    _
  %s4 = ssub.s32 1, %s2
  %s5 = scalar_select 0, %s4, %s2
  $region1: #{tpu_custom_call.1} parent=0
    #allocation2 [shape = 'u8[4096]{0}', space=vmem, size = 0x1000, scoped, tag = 'input window, operand 0, single buffered']
    #allocation3 [shape = 's32[1]{0}', space=sflag, size = 0x4, scoped, tag = 'scoped memory for tpu_custom_call.1']
    #allocation4 [shape = 's32[1]{0}', space=sflag, size = 0x4, scoped, tag = 'scoped memory for tpu_custom_call.1']
    #allocation5 [shape = 'u8[4096]{0}', space=vmem, size = 0x1000, scoped, tag = 'output window, operand 0, single buffered']
    %6 = vsyncpa [#allocation3], 0
    %7 = vsyncpa [#allocation4], 0
    // Predicated region
    $region2: #{tpu_custom_call.1} parent=1 // pred_check
      _
    $region3: #{tpu_custom_call.1} parent=1 // pred_check_branch
      %9 = sbr.rel (0) target = $region5
    $region4: #{tpu_custom_call.1} parent=1 // pred_region
      %11 = vsyncadd [#allocation3], 0
      %s13 = sshll.u32 %s0, 4
      %s14 = int_to_ptr.hbm [resolvable:$true] %s13
      %s15 = sshll.u32 [#allocation2], 4
      %s16 = int_to_ptr.vmem [resolvable:$true] %s15
      %18 = dma.hbm_to_vmem [thread:$0]  %s14, 128, %s16, [#allocation3]
    $region5: #{tpu_custom_call.1} parent=1 // pred_fallthru
      _
    // Predicated region
    $region6: #{tpu_custom_call.1} parent=1 // pred_check
      _
    $region7: #{tpu_custom_call.1} parent=1 // pred_check_branch
      %20 = sbr.rel (0) target = $region9
    $region8: #{tpu_custom_call.1} parent=1 // pred_region
      %22 = dma.done [#allocation3], 128
    $region9: #{tpu_custom_call.1} parent=1 // pred_fallthru
      _
    %v23 = vld [vmem:[#allocation2] sm:$0xff]
    %24 = vrot.lane.b32.xlu0 %v23, 1
    %v25 = vpop.permute.xlu0 %24
    %26 = vst [vmem:[#allocation5] sm:$0xff] %v25
    // Predicated region
    $region10: #{tpu_custom_call.1} parent=1 // pred_check
      _
    $region11: #{tpu_custom_call.1} parent=1 // pred_check_branch
      %28 = sbr.rel (0) target = $region13
    $region12: #{tpu_custom_call.1} parent=1 // pred_region
      %30 = vsyncadd [#allocation4], 0
      %s32 = sshll.u32 [#allocation5], 4
      %s33 = int_to_ptr.vmem [resolvable:$true] %s32
      %s34 = sshll.u32 %s1, 4
      %s35 = int_to_ptr.hbm [resolvable:$true] %s34
      %37 = dma.vmem_to_hbm [thread:$0]  %s33, 128, %s35, [#allocation4]
    $region13: #{tpu_custom_call.1} parent=1 // pred_fallthru
      _
    // Predicated region
    $region14: #{tpu_custom_call.1} parent=1 // pred_check
      _
    $region15: #{tpu_custom_call.1} parent=1 // pred_check_branch
      %39 = sbr.rel (0) target = $region17
    $region16: #{tpu_custom_call.1} parent=1 // pred_region
      %41 = dma.done [#allocation4], 128
    $region17: #{tpu_custom_call.1} parent=1 // pred_fallthru
      _
    %42 = vsyncpa [#allocation3], 1
    %43 = vsyncpa [#allocation4], 1

</llo_original>
